<compile_context>
chip_gen: v7x
topology: tpu7x:2x2x1
jax: 0.10.0
libtpu: 0.0.40
codegen_flags: <defaults>
</compile_context>

<pallas_src>
import functools

import jax
import jax.numpy as jnp
from jax.experimental import pallas as pl
from jax.experimental.pallas import tpu as pltpu


def _round_up(x: int, m: int) -> int:
    return ((x + m - 1) // m) * m


def _linear_kernel(x_ref, w_ref, b_ref, o_ref):
    """One row-tile of: y = x @ W + b."""
    h = jnp.dot(x_ref[...], w_ref[...], preferred_element_type=jnp.float32)
    o_ref[...] = (h + b_ref[...]).astype(o_ref.dtype)


def _linear_origin_kernel(x_ref, w_ref, b_ref, origin_ref, o_ref, *,
                          tile_rows: int, nodes_per_graph: int):
    """One row-tile of: y = x @ W + b; y[row % nodes_per_graph == 0] += origin."""
    i = pl.program_id(0)
    h = jnp.dot(x_ref[...], w_ref[...], preferred_element_type=jnp.float32)
    h = h + b_ref[...]                                      # (tile_rows, E) + (1, E)
    row0 = i * tile_rows

    if nodes_per_graph <= tile_rows:
        # Every tile contains at least one origin row -> apply the mask unconditionally.
        row = row0 + jax.lax.broadcasted_iota(jnp.int32, h.shape, 0)
        mask = (row % nodes_per_graph) == 0
        o_ref[...] = (h + jnp.where(mask, origin_ref[...], 0.0)).astype(o_ref.dtype)
    else:
        # Most tiles have no origin row: store the plain result, fix up only when needed.
        o_ref[...] = h.astype(o_ref.dtype)
        dist_to_origin = (nodes_per_graph - row0 % nodes_per_graph) % nodes_per_graph

        @pl.when(dist_to_origin < tile_rows)
        def _():
            row = row0 + jax.lax.broadcasted_iota(jnp.int32, h.shape, 0)
            mask = (row % nodes_per_graph) == 0
            o_ref[...] = (h + jnp.where(mask, origin_ref[...], 0.0)).astype(o_ref.dtype)


def _tiled_linear(x, w, b, *, origin=None, nodes_per_graph=None, tile_rows=1024):
    """y = x @ w + b (+ origin on every nodes_per_graph-th row), Pallas-tiled over rows.

    x: [rows, in_dim], w: [in_dim, embed_dim], b/origin: [1, embed_dim].
    Returns [rows, embed_dim] in x.dtype.
    """
    rows, in_dim = x.shape
    embed_dim = w.shape[1]
    out_dtype = x.dtype

    # Lane-dense output: pad the embedding (lane) axis to a multiple of 128.
    e_pad = _round_up(embed_dim, 128)
    if e_pad != embed_dim:
        w = jnp.pad(w, ((0, 0), (0, e_pad - embed_dim)))
        b = jnp.pad(b, ((0, 0), (0, e_pad - embed_dim)))
        if origin is not None:
            origin = jnp.pad(origin, ((0, 0), (0, e_pad - embed_dim)))

    # Large row tiles; pad rows up to a tile multiple (padded rows are sliced off).
    tile_rows = min(tile_rows, _round_up(rows, 8))
    rows_pad = _round_up(rows, tile_rows)
    if rows_pad != rows:
        x = jnp.pad(x, ((0, rows_pad - rows), (0, 0)))

    grid = (rows_pad // tile_rows,)
    x_spec = pl.BlockSpec((tile_rows, in_dim), lambda i: (i, 0))
    w_spec = pl.BlockSpec((in_dim, e_pad), lambda i: (0, 0))
    b_spec = pl.BlockSpec((1, e_pad), lambda i: (0, 0))
    o_spec = pl.BlockSpec((tile_rows, e_pad), lambda i: (i, 0))
    out_shape = jax.ShapeDtypeStruct((rows_pad, e_pad), out_dtype)
    cp = pltpu.CompilerParams(dimension_semantics=("parallel",),
                              vmem_limit_bytes=32 * 1024 * 1024)

    if origin is None:
        out = pl.pallas_call(
            _linear_kernel,
            out_shape=out_shape,
            grid=grid,
            in_specs=[x_spec, w_spec, b_spec],
            out_specs=o_spec,
            compiler_params=cp,
        )(x, w, b)
    else:
        kernel = functools.partial(_linear_origin_kernel,
                                   tile_rows=tile_rows,
                                   nodes_per_graph=nodes_per_graph)
        out = pl.pallas_call(
            kernel,
            out_shape=out_shape,
            grid=grid,
            in_specs=[x_spec, w_spec, b_spec, b_spec],   # origin shares b's spec shape
            out_specs=o_spec,
            compiler_params=cp,
        )(x, w, b, origin)

    # Strip row/lane padding.
    return out[:rows, :embed_dim]


def somd_init_embedding(nf, ef, params, num_graphs):
    """JAX/Pallas forward of SOMDInitEmbedding.

    nf: [num_nodes_total, node_dim]
    ef: [num_edges_total, edge_dim]
    returns (node_emb [num_nodes_total, embed_dim], edge_emb [num_edges_total, embed_dim])
    """
    num_nodes = nf.shape[0]
    # Matches the PyTorch `[::n]` semantics; ragged graphs are unsupported.
    assert num_nodes % num_graphs == 0
    n = num_nodes // num_graphs

    node_emb = _tiled_linear(nf, params["node_w"], params["node_b"],
                             origin=params["origin"], nodes_per_graph=n)
    edge_emb = _tiled_linear(ef, params["edge_w"], params["edge_b"])
    return node_emb, edge_emb


def init_params(key, node_dim, edge_dim, embed_dim):
    k1, k2, k3, k4, k5 = jax.random.split(key, 5)
    # Deterministic synthetic init (weights stored as [in_dim, embed_dim]).
    return {
        "node_w": jax.random.normal(k1, (node_dim, embed_dim), jnp.float32) * 0.1,
        "node_b": jax.random.normal(k2, (1, embed_dim), jnp.float32) * 0.1,
        "edge_w": jax.random.normal(k3, (edge_dim, embed_dim), jnp.float32) * 0.1,
        "edge_b": jax.random.normal(k4, (1, embed_dim), jnp.float32) * 0.1,
        "origin": jax.random.normal(k5, (1, embed_dim), jnp.float32),
    }


if __name__ == "__main__":
    key = jax.random.PRNGKey(0)
    node_dim, edge_dim, embed_dim = 4, 6, 32
    num_graphs = 2
    nodes_per_graph = 8
    num_nodes = num_graphs * nodes_per_graph   # 16
    num_edges = 24

    kp, kn, ke = jax.random.split(key, 3)
    params = init_params(kp, node_dim, edge_dim, embed_dim)
    nf = jax.random.normal(kn, (num_nodes, node_dim), jnp.float32)
    ef = jax.random.normal(ke, (num_edges, edge_dim), jnp.float32)

    node_emb, edge_emb = somd_init_embedding(nf, ef, params, num_graphs)
    jax.block_until_ready((node_emb, edge_emb))

    # Pure-JAX reference check.
    ref_node = nf @ params["node_w"] + params["node_b"]
    n = num_nodes // num_graphs
    ref_node = ref_node.at[::n].add(params["origin"][0])
    ref_edge = ef @ params["edge_w"] + params["edge_b"]
    assert node_emb.shape == ref_node.shape and edge_emb.shape == ref_edge.shape
    assert jnp.allclose(node_emb, ref_node, atol=1e-5), "node_emb mismatch"
    assert jnp.allclose(edge_emb, ref_edge, atol=1e-5), "edge_emb mismatch"

    print("KERNEL_OK")
</pallas_src>

<mosaic_0001>
module attributes {stable_mosaic.version = 11 : i64} {
  func.func @_linear_origin_kernel(%arg0: i32, %arg1: memref<16x4xf32, #tpu.memory_space<vmem>>, %arg2: memref<4x128xf32, #tpu.memory_space<vmem>>, %arg3: memref<1x128xf32, #tpu.memory_space<vmem>>, %arg4: memref<1x128xf32, #tpu.memory_space<vmem>>, %arg5: memref<16x128xf32, #tpu.memory_space<vmem>>) attributes {dimension_semantics = [#tpu.dimension_semantics<parallel>], iteration_bounds = array<i64: 1>, scalar_prefetch = 0 : i64, scratch_operands = 0 : i64, tpu.core_type = #tpu.core_type<tc>, window_params = [{transform_indices = @transform_0, window_bounds = array<i64: 16, 4>}, {pipeline_mode = #tpu.pipeline_mode<synchronous>, transform_indices = @transform_1, window_bounds = array<i64: 4, 128>}, {pipeline_mode = #tpu.pipeline_mode<synchronous>, transform_indices = @transform_2, window_bounds = array<i64: 1, 128>}, {pipeline_mode = #tpu.pipeline_mode<synchronous>, transform_indices = @transform_3, window_bounds = array<i64: 1, 128>}, {transform_indices = @transform_4, window_bounds = array<i64: 16, 128>}]} {
    %c0 = arith.constant 0 : index
    %c0_0 = arith.constant 0 : index
    %0 = vector.load %arg1[%c0, %c0_0] : memref<16x4xf32, #tpu.memory_space<vmem>>, vector<16x4xf32>
    %c0_1 = arith.constant 0 : index
    %c0_2 = arith.constant 0 : index
    %1 = vector.load %arg2[%c0_1, %c0_2] : memref<4x128xf32, #tpu.memory_space<vmem>>, vector<4x128xf32>
    %cst = arith.constant dense<0.000000e+00> : vector<16x128xf32>
    %2 = tpu.matmul %0, %1, %cst {dimension_numbers = #tpu.dot_dimension_numbers<[1], [0], [0], [1], [0, 0, 1, 1], [], []>} : vector<16x4xf32>, vector<4x128xf32>, vector<16x128xf32> -> vector<16x128xf32>
    %c0_3 = arith.constant 0 : index
    %c0_4 = arith.constant 0 : index
    %3 = vector.load %arg3[%c0_3, %c0_4] : memref<1x128xf32, #tpu.memory_space<vmem>>, vector<1x128xf32>
    %4 = vector.broadcast %3 : vector<1x128xf32> to vector<16x128xf32>
    %5 = arith.addf %2, %4 : vector<16x128xf32>
    %c16_i32 = arith.constant 16 : i32
    %6 = arith.muli %arg0, %c16_i32 : i32
    %7 = tpu.iota {dimensions = array<i32: 0>} : vector<16x128xi32>
    %8 = vector.broadcast %6 : i32 to vector<16x128xi32>
    %9 = arith.addi %8, %7 : vector<16x128xi32>
    %c8_i32 = arith.constant 8 : i32
    %c0_i32 = arith.constant 0 : i32
    %10 = arith.cmpi eq, %c8_i32, %c0_i32 : i32
    %c1_i32 = arith.constant 1 : i32
    %11 = arith.select %10, %c1_i32, %c8_i32 : i32
    %12 = vector.broadcast %11 : i32 to vector<16x128xi32>
    %13 = arith.remsi %9, %12 : vector<16x128xi32>
    %c0_i32_5 = arith.constant 0 : i32
    %14 = vector.broadcast %c0_i32_5 : i32 to vector<16x128xi32>
    %15 = arith.cmpi ne, %13, %14 : vector<16x128xi32>
    %c0_i32_6 = arith.constant 0 : i32
    %16 = vector.broadcast %c0_i32_6 : i32 to vector<16x128xi32>
    %17 = arith.cmpi slt, %13, %16 : vector<16x128xi32>
    %c0_i32_7 = arith.constant 0 : i32
    %18 = arith.cmpi slt, %11, %c0_i32_7 : i32
    %19 = vector.broadcast %18 : i1 to vector<16x128xi1>
    %20 = vector.broadcast %19 : vector<16x128xi1> to vector<16x128xi1>
    %21 = arith.xori %17, %20 : vector<16x128xi1>
    %22 = arith.andi %21, %15 : vector<16x128xi1>
    %23 = vector.broadcast %11 : i32 to vector<16x128xi32>
    %24 = arith.addi %13, %23 : vector<16x128xi32>
    %25 = arith.select %22, %24, %13 : vector<16x128xi1>, vector<16x128xi32>
    %c0_i32_8 = arith.constant 0 : i32
    %26 = vector.broadcast %c0_i32_8 : i32 to vector<16x128xi32>
    %27 = arith.cmpi eq, %25, %26 : vector<16x128xi32>
    %c0_9 = arith.constant 0 : index
    %c0_10 = arith.constant 0 : index
    %28 = vector.load %arg4[%c0_9, %c0_10] : memref<1x128xf32, #tpu.memory_space<vmem>>, vector<1x128xf32>
    %cst_11 = arith.constant 0.000000e+00 : f32
    %29 = vector.shape_cast %28 : vector<1x128xf32> to vector<1x128xf32>
    %30 = vector.broadcast %29 : vector<1x128xf32> to vector<16x128xf32>
    %31 = vector.broadcast %cst_11 : f32 to vector<16x128xf32>
    %32 = arith.select %27, %30, %31 : vector<16x128xi1>, vector<16x128xf32>
    %33 = arith.addf %5, %32 : vector<16x128xf32>
    %c0_12 = arith.constant 0 : index
    %c0_13 = arith.constant 0 : index
    %34 = vector.load %arg5[%c0_12, %c0_13] : memref<16x128xf32, #tpu.memory_space<vmem>>, vector<16x128xf32>
    tpu.vector_store %arg5[%c0_12, %c0_13], %33 {strides = array<i32>} : memref<16x128xf32, #tpu.memory_space<vmem>>, vector<16x128xf32>,
    return
  }
  func.func @transform_0(%arg0: i32) -> (i32, i32) {
    %c0_i32 = arith.constant 0 : i32
    %c0_i32_0 = arith.constant 0 : i32
    return %arg0, %c0_i32 : i32, i32
  }
  func.func @transform_1(%arg0: i32) -> (i32, i32) {
    %c0_i32 = arith.constant 0 : i32
    %c0_i32_0 = arith.constant 0 : i32
    %c0_i32_1 = arith.constant 0 : i32
    return %c0_i32, %c0_i32_0 : i32, i32
  }
  func.func @transform_2(%arg0: i32) -> (i32, i32) {
    %c0_i32 = arith.constant 0 : i32
    %c0_i32_0 = arith.constant 0 : i32
    %c0_i32_1 = arith.constant 0 : i32
    return %c0_i32, %c0_i32_0 : i32, i32
  }
  func.func @transform_3(%arg0: i32) -> (i32, i32) {
    %c0_i32 = arith.constant 0 : i32
    %c0_i32_0 = arith.constant 0 : i32
    %c0_i32_1 = arith.constant 0 : i32
    return %c0_i32, %c0_i32_0 : i32, i32
  }
  func.func @transform_4(%arg0: i32) -> (i32, i32) {
    %c0_i32 = arith.constant 0 : i32
    %c0_i32_0 = arith.constant 0 : i32
    return %arg0, %c0_i32 : i32, i32
  }
}

</mosaic_0001>

<llo_original>
// kernel: tpu_custom_call.1
$region0: #{tpu_custom_call.1}
  #allocation0 [shape = 'u32[]', space=smem, size = 0x4, offset = 0x4, fixed_abs, tag = 'smem constant byte address 0x4 - core index']
  #allocation1 [shape = 'u32[144,128]{1,0:T(1,128)}', space=vmem, size = 0x12000, scoped, tag = 'internal scratch']
  %s0 = inlined_call_operand.vmem [shape: f32[16,4], index: 0, kind: input, shape index: {}]
  %s1 = inlined_call_operand.vmem [shape: f32[4,128], index: 1, kind: input, shape index: {}]
  %s2 = inlined_call_operand.vmem [shape: f32[1,128], index: 2, kind: input, shape index: {}]
  %s3 = inlined_call_operand.vmem [shape: f32[1,128], index: 3, kind: input, shape index: {}]
  %s4 = inlined_call_operand.hbm [shape: f32[16,128], index: 4, kind: output, shape index: {}]
  %s5 = sld [smem:[#allocation0]]
  $region26: #{tpu_custom_call.1} parent=0
    _
  %s7 = ssub.s32 1, %s5
  %s8 = scalar_select 0, %s7, %s5
  $region1: #{tpu_custom_call.1} parent=0
    #allocation2 [shape = 'u8[8192]{0}', space=vmem, size = 0x2000, scoped, tag = 'output window, operand 0, single buffered']
    #allocation3 [shape = 's32[1]{0}', space=sflag, size = 0x4, scoped, tag = 'scoped memory for tpu_custom_call.1']
    %9 = vsyncpa [#allocation3], 0
    // Predicated region
    $region2: #{tpu_custom_call.1} parent=1 // pred_check
      _
    $region3: #{tpu_custom_call.1} parent=1 // pred_check_branch
      %11 = sbr.rel (0) target = $region5
    $region4: #{tpu_custom_call.1} parent=1 // pred_region
      _
    $region5: #{tpu_custom_call.1} parent=1 // pred_fallthru
      _
    // Predicated region
    $region6: #{tpu_custom_call.1} parent=1 // pred_check
      _
    $region7: #{tpu_custom_call.1} parent=1 // pred_check_branch
      %13 = sbr.rel (0) target = $region9
    $region8: #{tpu_custom_call.1} parent=1 // pred_region
      _
    $region9: #{tpu_custom_call.1} parent=1 // pred_fallthru
      _
    // Predicated region
    $region10: #{tpu_custom_call.1} parent=1 // pred_check
      _
    $region11: #{tpu_custom_call.1} parent=1 // pred_check_branch
      %15 = sbr.rel (0) target = $region13
    $region12: #{tpu_custom_call.1} parent=1 // pred_region
      _
    $region13: #{tpu_custom_call.1} parent=1 // pred_fallthru
      _
    // Predicated region
    $region14: #{tpu_custom_call.1} parent=1 // pred_check
      _
    $region15: #{tpu_custom_call.1} parent=1 // pred_check_branch
      %17 = sbr.rel (0) target = $region17
    $region16: #{tpu_custom_call.1} parent=1 // pred_region
      _
    $region17: #{tpu_custom_call.1} parent=1 // pred_fallthru
      _
    %v18 = vld [vmem:[%s0] sm:$0xff]
    %v19 = vld [vmem:[%s0 + $0x8] sm:$0xff]
    %v20 = vld [vmem:[%s1] sm:$0xf]
    %v21 = vld [vmem:[%s2] sm:$0x1]
    %v23 = vlaneseq
    %v24 = vshrl.u32 %v23, 7
    %v25 = vsub.s32 0, %v24
    %v26 = vrot.slane %v21, %v25
    %vm28 = vcmask 31744
    %v30 = vsel %vm28, %v18, 0
    %v33 = vsel %vm28, %v19, 0
    %vm35 = vcmask 1043456
    %v37 = vsel %vm35, %v20, 0
    %39 = vmatprep.subr.mxu0 0.0
    %40 = vmatpush1.msra.mxu0 %v37
    %41 = vmatprep.subr.mxu0 0.0
    %42 = vmatpush1.msra.mxu0 0.0
    %43 = vmatprep.subr.mxu0 0.0
    %44 = vmatpush1.msra.mxu0 0.0
    %45 = vmatprep.subr.mxu0 0.0
    %46 = vmatpush1.msra.mxu0 0.0
    %47 = vmatprep.subr.mxu0 0.0
    %48 = vmatpush1.msra.mxu0 0.0
    %49 = vmatprep.subr.mxu0 0.0
    %50 = vmatpush1.msra.mxu0 0.0
    %51 = vmatprep.subr.mxu0 0.0
    %52 = vmatpush1.msra.mxu0 0.0
    %53 = vmatprep.subr.mxu0 0.0
    %54 = vmatpush1.msra.mxu0 0.0
    %55 = vmatprep.subr.mxu0 0.0
    %56 = vmatpush1.msra.mxu0 0.0
    %57 = vmatprep.subr.mxu0 0.0
    %58 = vmatpush1.msra.mxu0 0.0
    %59 = vmatprep.subr.mxu0 0.0
    %60 = vmatpush1.msra.mxu0 0.0
    %61 = vmatprep.subr.mxu0 0.0
    %62 = vmatpush1.msra.mxu0 0.0
    %63 = vmatprep.subr.mxu0 0.0
    %64 = vmatpush1.msra.mxu0 0.0
    %65 = vmatprep.subr.mxu0 0.0
    %66 = vmatpush1.msra.mxu0 0.0
    %67 = vmatprep.subr.mxu0 0.0
    %68 = vmatpush1.msra.mxu0 0.0
    %69 = vmatprep.subr.mxu0 0.0
    %70 = vmatpush1.msra.mxu0 0.0
    %71 = vmatprep.subr.mxu0 0.0
    %72 = vmatpush1.msra.mxu0 0.0
    %73 = vmatprep.subr.mxu0 0.0
    %74 = vmatpush1.msra.mxu0 0.0
    %75 = vmatprep.subr.mxu0 0.0
    %76 = vmatpush1.msra.mxu0 0.0
    %77 = vmatprep.subr.mxu0 0.0
    %78 = vmatpush1.msra.mxu0 0.0
    %79 = vmatprep.subr.mxu0 0.0
    %80 = vmatpush1.msra.mxu0 0.0
    %81 = vmatprep.subr.mxu0 0.0
    %82 = vmatpush1.msra.mxu0 0.0
    %83 = vmatprep.subr.mxu0 0.0
    %84 = vmatpush1.msra.mxu0 0.0
    %85 = vmatprep.subr.mxu0 0.0
    %86 = vmatpush1.msra.mxu0 0.0
    %87 = vmatprep.subr.mxu0 0.0
    %88 = vmatpush1.msra.mxu0 0.0
    %89 = vmatprep.subr.mxu0 0.0
    %90 = vmatpush1.msra.mxu0 0.0
    %91 = vmatprep.subr.mxu0 0.0
    %92 = vmatpush1.msra.mxu0 0.0
    %93 = vmatprep.subr.mxu0 0.0
    %94 = vmatpush1.msra.mxu0 0.0
    %95 = vmatprep.subr.mxu0 0.0
    %96 = vmatpush1.msra.mxu0 0.0
    %97 = vmatprep.subr.mxu0 0.0
    %98 = vmatpush1.msra.mxu0 0.0
    %99 = vmatprep.subr.mxu0 0.0
    %100 = vmatpush1.msra.mxu0 0.0
    %101 = vmatprep.subr.mxu0 0.0
    %102 = vmatpush1.msra.mxu0 0.0
    %103 = vmatprep.mubr.f32.mxu0 0.0
    %104 = vmatmul.mubr.f32.gmra.mrb[0].mxu0 %v30
    %v105 = vpop.f32.mrb[0].mxu0
    %v106 = vadd.f32 %v26, %v105
    %v107 = vpop.f32.mrb[0].mxu0
    %108 = vmatprep.mubr.f32.mxu0 0.0
    %109 = vmatmul.mubr.f32.gmra.mrb[0].mxu0 %v33
    %v110 = vpop.f32.mrb[0].mxu0
    %v111 = vadd.f32 %v26, %v110
    %v112 = vpop.f32.mrb[0].mxu0
    %113 = vdwg.mxu0
    %s114 = smul.u32 0, 16
    %v115 = vlaneseq
    %v116 = vshrl.u32 %v115, 7
    %v117 = vadd.s32 %v116, 8
    %v118 = vstv %s114
    %v119 = vadd.s32 %v118, %v116
    %v120 = vadd.s32 %v118, %v117
    %vm121 = vcmp.lt.s32.totalorder %v119, 0
    %v122 = vsub.s32 0, %v119
    %v123 = vsel %vm121, %v122, %v119
    %v124 = vshrl.u32 %v123, 3
    %v125 = vand.u32 %v123, 7
    %v126 = vsub.s32 0, %v125
    %v127 = vsel %vm121, %v126, %v125
    %vm128 = vcmp.lt.s32.totalorder %v120, 0
    %v129 = vsub.s32 0, %v120
    %v130 = vsel %vm128, %v129, %v120
    %v131 = vshrl.u32 %v130, 3
    %v132 = vand.u32 %v130, 7
    %v133 = vsub.s32 0, %v132
    %v134 = vsel %vm128, %v133, %v132
    %vm135 = vcmp.ne.s32.totalorder %v127, 0
    %vm136 = vcmp.ne.s32.totalorder %v134, 0
    %vm137 = vcmp.lt.s32.totalorder %v127, 0
    %vm138 = vcmp.lt.s32.totalorder %v134, 0
    %vm139 = vmand %vm137, %vm135
    %vm140 = vmand %vm138, %vm136
    %v141 = vadd.s32 %v127, 8
    %v142 = vadd.s32 %v134, 8
    %v143 = vsel %vm139, %v141, %v127
    %v144 = vsel %vm140, %v142, %v134
    %vm145 = vcmp.eq.s32.totalorder %v143, 0
    %vm146 = vcmp.eq.s32.totalorder %v144, 0
    %v147 = vld [vmem:[%s3] sm:$0x1]
    %v149 = vlaneseq
    %v150 = vshrl.u32 %v149, 7
    %v151 = vsub.s32 0, %v150
    %v152 = vrot.slane %v147, %v151
    %v154 = vsel %vm145, %v152, 0.0
    %v155 = vsel %vm146, %v152, 0.0
    %v156 = vadd.f32 %v106, %v154
    %v157 = vadd.f32 %v111, %v155
    %158 = vst [vmem:[#allocation2] sm:$0xff] %v156
    %159 = vst [vmem:[#allocation2 + $0x8] sm:$0xff] %v157
    // Predicated region
    $region18: #{tpu_custom_call.1} parent=1 // pred_check
      _
    $region19: #{tpu_custom_call.1} parent=1 // pred_check_branch
      %161 = sbr.rel (0) target = $region21
    $region20: #{tpu_custom_call.1} parent=1 // pred_region
      %s163 = ssub.s32 256, 256
      %164 = vsyncadd [#allocation3], %s163
      %s165 = sshll.u32 [#allocation2], 4
      %s166 = int_to_ptr.vmem [resolvable:$true] %s165
      %171 = dma.vmem_to_hbm [thread:$0]  %s166, 256, %s4, [#allocation3], 128, 128, 8
    $region21: #{tpu_custom_call.1} parent=1 // pred_fallthru
      _
    // Predicated region
    $region22: #{tpu_custom_call.1} parent=1 // pred_check
      _
    $region23: #{tpu_custom_call.1} parent=1 // pred_check_branch
      %173 = sbr.rel (0) target = $region25
    $region24: #{tpu_custom_call.1} parent=1 // pred_region
      %174 = dma.done [#allocation3], 256
    $region25: #{tpu_custom_call.1} parent=1 // pred_fallthru
      _
    %175 = vsyncpa [#allocation3], 1

</llo_original>
